<compile_context>
chip_gen: v5e
topology: v5e:2x2
jax: 0.10.0
libtpu: 0.0.40
codegen_flags: <defaults>
</compile_context>

<pallas_src>
import math

import jax
import jax.numpy as jnp
from jax.experimental import pallas as pl
from jax.experimental.pallas import tpu as pltpu

HIDDEN_SIZE = 16      # hidden_size in the reference script
EMBEDDING_SIZE = 16   # embedding_size in the reference script
VOCAB_SIZE = 10       # synthetic vocab for the embedding table
SEQ_LEN = 8           # example sequence length for the fused-loop kernel


def _encoder_gru_seq_kernel(gi_ref, whh_ref, bhh_ref, h0_ref, out_ref):
    """Whole encoder GRU recurrence in a single kernel invocation.

    gi_ref  : VMEM (T, 3H)  precomputed input gates  gi_t = emb[tok_t] @ Wih^T + b_ih
    whh_ref : VMEM (H, 3H)  W_hh^T
    bhh_ref : VMEM (1, 3H)  b_hh
    h0_ref  : VMEM (1, H)   initial hidden state
    out_ref : VMEM (T, 4H)  packed per-step output [hy | rg | ig | ng]
    """
    T = gi_ref.shape[0]
    H = h0_ref.shape[1]

    whh = whh_ref[...]          # loaded once, stays in vregs
    bhh = bhh_ref[...]
    h = h0_ref[...]             # (1, H) recurrent carry lives in vregs

    rows = []
    # Static unroll over the (small, static) sequence length: no per-step grid
    # overhead, no per-step DMA, recurrence never leaves registers.
    for t in range(T):
        gi = gi_ref[t:t + 1, :]                                   # (1, 3H) static row
        gh = jnp.dot(h, whh, preferred_element_type=jnp.float32) + bhh
        i_r, i_i, i_n = gi[:, 0:H], gi[:, H:2 * H], gi[:, 2 * H:3 * H]
        h_r, h_i, h_n = gh[:, 0:H], gh[:, H:2 * H], gh[:, 2 * H:3 * H]
        resetgate = jax.nn.sigmoid(i_r + h_r)                     # EUP
        inputgate = jax.nn.sigmoid(i_i + h_i)
        newgate = jnp.tanh(i_n + resetgate * h_n)
        h = newgate + inputgate * (h - newgate)
        rows.append(jnp.concatenate([h, resetgate, inputgate, newgate], axis=1))

    # Single packed store -> single writeback DMA for the whole sequence.
    out_ref[...] = jnp.concatenate(rows, axis=0)


def prepare_encoder_params(emb_table, weight_ih, weight_hh, bias_ih, bias_hh):
    """One-time parameter prep (hoisted out of the per-token path).

    weight_ih: (3H, E)  weight_hh: (3H, H)  -- PyTorch GRUCell layout.
    Returns (gi_table, whh_t, bhh):
      gi_table : (V, 3H)  emb_table @ W_ih^T + b_ih   (input path fully folded)
      whh_t    : (H, 3H)  W_hh^T
      bhh      : (1, 3H)  b_hh
    """
    H = weight_hh.shape[1]
    assert weight_ih.shape[0] == 3 * H and weight_hh.shape[0] == 3 * H
    f32 = jnp.float32
    gi_table = (jnp.dot(emb_table.astype(f32), weight_ih.T.astype(f32),
                        preferred_element_type=f32)
                + bias_ih.astype(f32)[None, :])                   # (V, 3H)
    whh_t = weight_hh.T.astype(f32)                               # (H, 3H)
    bhh = bias_hh.astype(f32).reshape(1, 3 * H)                   # (1, 3H)
    return gi_table, whh_t, bhh


def my_encoder_rnn_encode(tokens, gi_table, whh_t, bhh, hidden0=None):
    """Run the encoder GRU over a whole token sequence in ONE pallas_call.

    tokens: int32 (T,).  Returns per-step (hy, resetgate, inputgate, newgate),
    each of shape (T, H); hy[t] is the hidden state after consuming tokens[t].
    """
    H = gi_table.shape[1] // 3
    T = tokens.shape[0]
    tokens = tokens.astype(jnp.int32)
    if hidden0 is None:
        hidden0 = jnp.zeros((1, H), jnp.float32)
    hidden0 = hidden0.reshape(1, H).astype(jnp.float32)

    # Tiny one-time gather of the T needed gate rows; the vocab table never
    # enters the kernel (VMEM footprint independent of vocab size).
    gi_seq = jnp.take(gi_table, tokens, axis=0)                   # (T, 3H)

    packed = pl.pallas_call(
        _encoder_gru_seq_kernel,
        out_shape=jax.ShapeDtypeStruct((T, 4 * H), jnp.float32),
        grid=(1,),                                  # single invocation: loop is in-kernel
        in_specs=[
            pl.BlockSpec((T, 3 * H), lambda i: (0, 0)),     # gi_seq
            pl.BlockSpec((H, 3 * H), lambda i: (0, 0)),     # W_hh^T
            pl.BlockSpec((1, 3 * H), lambda i: (0, 0)),     # b_hh
            pl.BlockSpec((1, H), lambda i: (0, 0)),         # h0
        ],
        out_specs=pl.BlockSpec((T, 4 * H), lambda i: (0, 0)),
        compiler_params=pltpu.CompilerParams(
            dimension_semantics=("arbitrary",)),
    )(gi_seq, whh_t, bhh, hidden0)

    hy = packed[:, 0:H]
    rg = packed[:, H:2 * H]
    ig = packed[:, 2 * H:3 * H]
    ng = packed[:, 3 * H:4 * H]
    return hy, rg, ig, ng


def my_encoder_rnn_forward(token, gi_table, whh_t, bhh, hidden=None):
    """Equivalent of MyEncoderRNN.forward for a single (batch==1) token.

    Returns (output, hidden_unsq, resetgate, inputgate, newgate) with shapes
    ((1,H), (1,1,H), (1,H), (1,H), (1,H)).
    """
    H = gi_table.shape[1] // 3
    if hidden is not None:
        hidden = hidden.reshape(1, H)
    hy, rg, ig, ng = my_encoder_rnn_encode(token.reshape(-1), gi_table, whh_t,
                                           bhh, hidden0=hidden)
    out = hy[0:1]
    return out, out[None, :, :], rg[0:1], ig[0:1], ng[0:1]


def _reference_encode(tokens, emb_table, weight_ih, weight_hh, bias_ih, bias_hh,
                      hidden0=None):
    """Pure-JAX reference: repeated MyGRUCell.GRUCell steps (Python loop)."""
    H = weight_hh.shape[1]
    h = jnp.zeros((1, H), jnp.float32) if hidden0 is None else hidden0.reshape(1, H)
    hys, rgs, igs, ngs = [], [], [], []
    for t in range(tokens.shape[0]):
        x = emb_table[tokens[t]].reshape(1, -1)
        gi = x @ weight_ih.T + bias_ih
        gh = h @ weight_hh.T + bias_hh
        i_r, i_i, i_n = gi[:, :H], gi[:, H:2 * H], gi[:, 2 * H:]
        h_r, h_i, h_n = gh[:, :H], gh[:, H:2 * H], gh[:, 2 * H:]
        rg = jax.nn.sigmoid(i_r + h_r)
        ig = jax.nn.sigmoid(i_i + h_i)
        ng = jnp.tanh(i_n + rg * h_n)
        h = ng + ig * (h - ng)
        hys.append(h); rgs.append(rg); igs.append(ig); ngs.append(ng)
    return (jnp.concatenate(hys), jnp.concatenate(rgs),
            jnp.concatenate(igs), jnp.concatenate(ngs))


if __name__ == "__main__":
    key = jax.random.PRNGKey(0)
    k_emb, k_wih, k_whh, k_bih, k_bhh, k_tok = jax.random.split(key, 6)

    H, E, V, T = HIDDEN_SIZE, EMBEDDING_SIZE, VOCAB_SIZE, SEQ_LEN

    # PyTorch GRUCell parameter layout: weight_ih (3H, E), weight_hh (3H, H).
    stdv = 1.0 / math.sqrt(H)
    weight_ih = jax.random.uniform(k_wih, (3 * H, E), jnp.float32, -stdv, stdv)
    weight_hh = jax.random.uniform(k_whh, (3 * H, H), jnp.float32, -stdv, stdv)
    bias_ih = jax.random.uniform(k_bih, (3 * H,), jnp.float32, -stdv, stdv)
    bias_hh = jax.random.uniform(k_bhh, (3 * H,), jnp.float32, -stdv, stdv)
    emb_table = jax.random.normal(k_emb, (V, E), jnp.float32)
    tokens = jax.random.randint(k_tok, (T,), 0, V, dtype=jnp.int32)

    # One-time param prep (transpose / bias reshape / gi-table fold hoisted here).
    gi_table, whh_t, bhh = prepare_encoder_params(
        emb_table, weight_ih, weight_hh, bias_ih, bias_hh)

    # Whole sequence in one pallas_call (exercises the h-dependent path too).
    hy, rg, ig, ng = jax.block_until_ready(
        my_encoder_rnn_encode(tokens, gi_table, whh_t, bhh))

    ref_hy, ref_rg, ref_ig, ref_ng = _reference_encode(
        tokens, emb_table, weight_ih, weight_hh, bias_ih, bias_hh)

    for got, want in ((hy, ref_hy), (rg, ref_rg), (ig, ref_ig), (ng, ref_ng)):
        assert got.shape == want.shape, (got.shape, want.shape)
        assert jnp.allclose(got, want, atol=1e-5, rtol=1e-5)

    # Single-token call, exact MyEncoderRNN.forward semantics (hidden=None).
    outs = jax.block_until_ready(
        my_encoder_rnn_forward(tokens[:1], gi_table, whh_t, bhh))
    assert outs[0].shape == (1, H) and outs[1].shape == (1, 1, H)
    assert jnp.allclose(outs[0], ref_hy[0:1], atol=1e-5, rtol=1e-5)
    assert jnp.allclose(outs[2], ref_rg[0:1], atol=1e-5, rtol=1e-5)
    assert jnp.allclose(outs[3], ref_ig[0:1], atol=1e-5, rtol=1e-5)
    assert jnp.allclose(outs[4], ref_ng[0:1], atol=1e-5, rtol=1e-5)

    # And with an explicitly provided non-zero hidden (h-dependent path).
    outs2 = jax.block_until_ready(
        my_encoder_rnn_forward(tokens[1:2], gi_table, whh_t, bhh,
                               hidden=ref_hy[0:1]))
    assert jnp.allclose(outs2[0], ref_hy[1:2], atol=1e-5, rtol=1e-5)

    print("KERNEL_OK")
</pallas_src>

<mosaic_0001>
module attributes {stable_mosaic.version = 11 : i64} {
  func.func @_encoder_gru_seq_kernel(%arg0: i32, %arg1: memref<8x48xf32, #tpu.memory_space<vmem>>, %arg2: memref<16x48xf32, #tpu.memory_space<vmem>>, %arg3: memref<1x48xf32, #tpu.memory_space<vmem>>, %arg4: memref<1x16xf32, #tpu.memory_space<vmem>>, %arg5: memref<8x64xf32, #tpu.memory_space<vmem>>) attributes {dimension_semantics = [#tpu.dimension_semantics<arbitrary>], iteration_bounds = array<i64: 1>, scalar_prefetch = 0 : i64, scratch_operands = 0 : i64, tpu.core_type = #tpu.core_type<tc>, window_params = [{pipeline_mode = #tpu.pipeline_mode<synchronous>, transform_indices = @transform_0, window_bounds = array<i64: 8, 48>}, {pipeline_mode = #tpu.pipeline_mode<synchronous>, transform_indices = @transform_1, window_bounds = array<i64: 16, 48>}, {pipeline_mode = #tpu.pipeline_mode<synchronous>, transform_indices = @transform_2, window_bounds = array<i64: 1, 48>}, {pipeline_mode = #tpu.pipeline_mode<synchronous>, transform_indices = @transform_3, window_bounds = array<i64: 1, 16>}, {pipeline_mode = #tpu.pipeline_mode<synchronous>, transform_indices = @transform_4, window_bounds = array<i64: 8, 64>}]} {
    %c0 = arith.constant 0 : index
    %c0_0 = arith.constant 0 : index
    %0 = vector.load %arg2[%c0, %c0_0] : memref<16x48xf32, #tpu.memory_space<vmem>>, vector<16x48xf32>
    %c0_1 = arith.constant 0 : index
    %c0_2 = arith.constant 0 : index
    %1 = vector.load %arg3[%c0_1, %c0_2] : memref<1x48xf32, #tpu.memory_space<vmem>>, vector<1x48xf32>
    %c0_3 = arith.constant 0 : index
    %c0_4 = arith.constant 0 : index
    %2 = vector.load %arg4[%c0_3, %c0_4] : memref<1x16xf32, #tpu.memory_space<vmem>>, vector<1x16xf32>
    %c0_5 = arith.constant 0 : index
    %c0_6 = arith.constant 0 : index
    %3 = vector.load %arg1[%c0_5, %c0_6] : memref<8x48xf32, #tpu.memory_space<vmem>>, vector<1x48xf32>
    %cst = arith.constant dense<0.000000e+00> : vector<1x48xf32>
    %4 = tpu.matmul %2, %0, %cst {dimension_numbers = #tpu.dot_dimension_numbers<[1], [0], [0], [1], [0, 0, 1, 1], [], []>} : vector<1x16xf32>, vector<16x48xf32>, vector<1x48xf32> -> vector<1x48xf32>
    %5 = arith.addf %4, %1 : vector<1x48xf32>
    %6 = vector.extract_strided_slice %3 {offsets = [0, 0], sizes = [1, 16], strides = [1, 1]} : vector<1x48xf32> to vector<1x16xf32>
    %7 = vector.extract_strided_slice %3 {offsets = [0, 16], sizes = [1, 16], strides = [1, 1]} : vector<1x48xf32> to vector<1x16xf32>
    %8 = vector.extract_strided_slice %3 {offsets = [0, 32], sizes = [1, 16], strides = [1, 1]} : vector<1x48xf32> to vector<1x16xf32>
    %9 = vector.extract_strided_slice %5 {offsets = [0, 0], sizes = [1, 16], strides = [1, 1]} : vector<1x48xf32> to vector<1x16xf32>
    %10 = vector.extract_strided_slice %5 {offsets = [0, 16], sizes = [1, 16], strides = [1, 1]} : vector<1x48xf32> to vector<1x16xf32>
    %11 = vector.extract_strided_slice %5 {offsets = [0, 32], sizes = [1, 16], strides = [1, 1]} : vector<1x48xf32> to vector<1x16xf32>
    %12 = arith.addf %6, %9 : vector<1x16xf32>
    %13 = arith.negf %12 : vector<1x16xf32>
    %14 = math.exp %13 : vector<1x16xf32>
    %cst_7 = arith.constant 1.000000e+00 : f32
    %15 = vector.broadcast %cst_7 : f32 to vector<1x16xf32>
    %16 = arith.addf %15, %14 : vector<1x16xf32>
    %17 = arith.divf %15, %16 : vector<1x16xf32>
    %18 = arith.addf %7, %10 : vector<1x16xf32>
    %19 = arith.negf %18 : vector<1x16xf32>
    %20 = math.exp %19 : vector<1x16xf32>
    %cst_8 = arith.constant 1.000000e+00 : f32
    %21 = vector.broadcast %cst_8 : f32 to vector<1x16xf32>
    %22 = arith.addf %21, %20 : vector<1x16xf32>
    %23 = arith.divf %21, %22 : vector<1x16xf32>
    %24 = arith.mulf %17, %11 : vector<1x16xf32>
    %25 = arith.addf %8, %24 : vector<1x16xf32>
    %26 = math.tanh %25 : vector<1x16xf32>
    %27 = arith.subf %2, %26 : vector<1x16xf32>
    %28 = arith.mulf %23, %27 : vector<1x16xf32>
    %29 = arith.addf %26, %28 : vector<1x16xf32>
    %30 = tpu.concatenate %29, %17, %23, %26 in 1 : vector<1x16xf32>, vector<1x16xf32>, vector<1x16xf32>, vector<1x16xf32> -> vector<1x64xf32>
    %c1 = arith.constant 1 : index
    %c0_9 = arith.constant 0 : index
    %31 = vector.load %arg1[%c1, %c0_9] : memref<8x48xf32, #tpu.memory_space<vmem>>, vector<1x48xf32>
    %cst_10 = arith.constant dense<0.000000e+00> : vector<1x48xf32>
    %32 = tpu.matmul %29, %0, %cst_10 {dimension_numbers = #tpu.dot_dimension_numbers<[1], [0], [0], [1], [0, 0, 1, 1], [], []>} : vector<1x16xf32>, vector<16x48xf32>, vector<1x48xf32> -> vector<1x48xf32>
    %33 = arith.addf %32, %1 : vector<1x48xf32>
    %34 = vector.extract_strided_slice %31 {offsets = [0, 0], sizes = [1, 16], strides = [1, 1]} : vector<1x48xf32> to vector<1x16xf32>
    %35 = vector.extract_strided_slice %31 {offsets = [0, 16], sizes = [1, 16], strides = [1, 1]} : vector<1x48xf32> to vector<1x16xf32>
    %36 = vector.extract_strided_slice %31 {offsets = [0, 32], sizes = [1, 16], strides = [1, 1]} : vector<1x48xf32> to vector<1x16xf32>
    %37 = vector.extract_strided_slice %33 {offsets = [0, 0], sizes = [1, 16], strides = [1, 1]} : vector<1x48xf32> to vector<1x16xf32>
    %38 = vector.extract_strided_slice %33 {offsets = [0, 16], sizes = [1, 16], strides = [1, 1]} : vector<1x48xf32> to vector<1x16xf32>
    %39 = vector.extract_strided_slice %33 {offsets = [0, 32], sizes = [1, 16], strides = [1, 1]} : vector<1x48xf32> to vector<1x16xf32>
    %40 = arith.addf %34, %37 : vector<1x16xf32>
    %41 = arith.negf %40 : vector<1x16xf32>
    %42 = math.exp %41 : vector<1x16xf32>
    %cst_11 = arith.constant 1.000000e+00 : f32
    %43 = vector.broadcast %cst_11 : f32 to vector<1x16xf32>
    %44 = arith.addf %43, %42 : vector<1x16xf32>
    %45 = arith.divf %43, %44 : vector<1x16xf32>
    %46 = arith.addf %35, %38 : vector<1x16xf32>
    %47 = arith.negf %46 : vector<1x16xf32>
    %48 = math.exp %47 : vector<1x16xf32>
    %cst_12 = arith.constant 1.000000e+00 : f32
    %49 = vector.broadcast %cst_12 : f32 to vector<1x16xf32>
    %50 = arith.addf %49, %48 : vector<1x16xf32>
    %51 = arith.divf %49, %50 : vector<1x16xf32>
    %52 = arith.mulf %45, %39 : vector<1x16xf32>
    %53 = arith.addf %36, %52 : vector<1x16xf32>
    %54 = math.tanh %53 : vector<1x16xf32>
    %55 = arith.subf %29, %54 : vector<1x16xf32>
    %56 = arith.mulf %51, %55 : vector<1x16xf32>
    %57 = arith.addf %54, %56 : vector<1x16xf32>
    %58 = tpu.concatenate %57, %45, %51, %54 in 1 : vector<1x16xf32>, vector<1x16xf32>, vector<1x16xf32>, vector<1x16xf32> -> vector<1x64xf32>
    %c2 = arith.constant 2 : index
    %c0_13 = arith.constant 0 : index
    %59 = vector.load %arg1[%c2, %c0_13] : memref<8x48xf32, #tpu.memory_space<vmem>>, vector<1x48xf32>
    %cst_14 = arith.constant dense<0.000000e+00> : vector<1x48xf32>
    %60 = tpu.matmul %57, %0, %cst_14 {dimension_numbers = #tpu.dot_dimension_numbers<[1], [0], [0], [1], [0, 0, 1, 1], [], []>} : vector<1x16xf32>, vector<16x48xf32>, vector<1x48xf32> -> vector<1x48xf32>
    %61 = arith.addf %60, %1 : vector<1x48xf32>
    %62 = vector.extract_strided_slice %59 {offsets = [0, 0], sizes = [1, 16], strides = [1, 1]} : vector<1x48xf32> to vector<1x16xf32>
    %63 = vector.extract_strided_slice %59 {offsets = [0, 16], sizes = [1, 16], strides = [1, 1]} : vector<1x48xf32> to vector<1x16xf32>
    %64 = vector.extract_strided_slice %59 {offsets = [0, 32], sizes = [1, 16], strides = [1, 1]} : vector<1x48xf32> to vector<1x16xf32>
    %65 = vector.extract_strided_slice %61 {offsets = [0, 0], sizes = [1, 16], strides = [1, 1]} : vector<1x48xf32> to vector<1x16xf32>
    %66 = vector.extract_strided_slice %61 {offsets = [0, 16], sizes = [1, 16], strides = [1, 1]} : vector<1x48xf32> to vector<1x16xf32>
    %67 = vector.extract_strided_slice %61 {offsets = [0, 32], sizes = [1, 16], strides = [1, 1]} : vector<1x48xf32> to vector<1x16xf32>
    %68 = arith.addf %62, %65 : vector<1x16xf32>
    %69 = arith.negf %68 : vector<1x16xf32>
    %70 = math.exp %69 : vector<1x16xf32>
    %cst_15 = arith.constant 1.000000e+00 : f32
    %71 = vector.broadcast %cst_15 : f32 to vector<1x16xf32>
    %72 = arith.addf %71, %70 : vector<1x16xf32>
    %73 = arith.divf %71, %72 : vector<1x16xf32>
    %74 = arith.addf %63, %66 : vector<1x16xf32>
    %75 = arith.negf %74 : vector<1x16xf32>
    %76 = math.exp %75 : vector<1x16xf32>
    %cst_16 = arith.constant 1.000000e+00 : f32
    %77 = vector.broadcast %cst_16 : f32 to vector<1x16xf32>
    %78 = arith.addf %77, %76 : vector<1x16xf32>
    %79 = arith.divf %77, %78 : vector<1x16xf32>
    %80 = arith.mulf %73, %67 : vector<1x16xf32>
    %81 = arith.addf %64, %80 : vector<1x16xf32>
    %82 = math.tanh %81 : vector<1x16xf32>
    %83 = arith.subf %57, %82 : vector<1x16xf32>
    %84 = arith.mulf %79, %83 : vector<1x16xf32>
    %85 = arith.addf %82, %84 : vector<1x16xf32>
    %86 = tpu.concatenate %85, %73, %79, %82 in 1 : vector<1x16xf32>, vector<1x16xf32>, vector<1x16xf32>, vector<1x16xf32> -> vector<1x64xf32>
    %c3 = arith.constant 3 : index
    %c0_17 = arith.constant 0 : index
    %87 = vector.load %arg1[%c3, %c0_17] : memref<8x48xf32, #tpu.memory_space<vmem>>, vector<1x48xf32>
    %cst_18 = arith.constant dense<0.000000e+00> : vector<1x48xf32>
    %88 = tpu.matmul %85, %0, %cst_18 {dimension_numbers = #tpu.dot_dimension_numbers<[1], [0], [0], [1], [0, 0, 1, 1], [], []>} : vector<1x16xf32>, vector<16x48xf32>, vector<1x48xf32> -> vector<1x48xf32>
    %89 = arith.addf %88, %1 : vector<1x48xf32>
    %90 = vector.extract_strided_slice %87 {offsets = [0, 0], sizes = [1, 16], strides = [1, 1]} : vector<1x48xf32> to vector<1x16xf32>
    %91 = vector.extract_strided_slice %87 {offsets = [0, 16], sizes = [1, 16], strides = [1, 1]} : vector<1x48xf32> to vector<1x16xf32>
    %92 = vector.extract_strided_slice %87 {offsets = [0, 32], sizes = [1, 16], strides = [1, 1]} : vector<1x48xf32> to vector<1x16xf32>
    %93 = vector.extract_strided_slice %89 {offsets = [0, 0], sizes = [1, 16], strides = [1, 1]} : vector<1x48xf32> to vector<1x16xf32>
    %94 = vector.extract_strided_slice %89 {offsets = [0, 16], sizes = [1, 16], strides = [1, 1]} : vector<1x48xf32> to vector<1x16xf32>
    %95 = vector.extract_strided_slice %89 {offsets = [0, 32], sizes = [1, 16], strides = [1, 1]} : vector<1x48xf32> to vector<1x16xf32>
    %96 = arith.addf %90, %93 : vector<1x16xf32>
    %97 = arith.negf %96 : vector<1x16xf32>
    %98 = math.exp %97 : vector<1x16xf32>
    %cst_19 = arith.constant 1.000000e+00 : f32
    %99 = vector.broadcast %cst_19 : f32 to vector<1x16xf32>
    %100 = arith.addf %99, %98 : vector<1x16xf32>
    %101 = arith.divf %99, %100 : vector<1x16xf32>
    %102 = arith.addf %91, %94 : vector<1x16xf32>
    %103 = arith.negf %102 : vector<1x16xf32>
    %104 = math.exp %103 : vector<1x16xf32>
    %cst_20 = arith.constant 1.000000e+00 : f32
    %105 = vector.broadcast %cst_20 : f32 to vector<1x16xf32>
    %106 = arith.addf %105, %104 : vector<1x16xf32>
    %107 = arith.divf %105, %106 : vector<1x16xf32>
    %108 = arith.mulf %101, %95 : vector<1x16xf32>
    %109 = arith.addf %92, %108 : vector<1x16xf32>
    %110 = math.tanh %109 : vector<1x16xf32>
    %111 = arith.subf %85, %110 : vector<1x16xf32>
    %112 = arith.mulf %107, %111 : vector<1x16xf32>
    %113 = arith.addf %110, %112 : vector<1x16xf32>
    %114 = tpu.concatenate %113, %101, %107, %110 in 1 : vector<1x16xf32>, vector<1x16xf32>, vector<1x16xf32>, vector<1x16xf32> -> vector<1x64xf32>
    %c4 = arith.constant 4 : index
    %c0_21 = arith.constant 0 : index
    %115 = vector.load %arg1[%c4, %c0_21] : memref<8x48xf32, #tpu.memory_space<vmem>>, vector<1x48xf32>
    %cst_22 = arith.constant dense<0.000000e+00> : vector<1x48xf32>
    %116 = tpu.matmul %113, %0, %cst_22 {dimension_numbers = #tpu.dot_dimension_numbers<[1], [0], [0], [1], [0, 0, 1, 1], [], []>} : vector<1x16xf32>, vector<16x48xf32>, vector<1x48xf32> -> vector<1x48xf32>
    %117 = arith.addf %116, %1 : vector<1x48xf32>
    %118 = vector.extract_strided_slice %115 {offsets = [0, 0], sizes = [1, 16], strides = [1, 1]} : vector<1x48xf32> to vector<1x16xf32>
    %119 = vector.extract_strided_slice %115 {offsets = [0, 16], sizes = [1, 16], strides = [1, 1]} : vector<1x48xf32> to vector<1x16xf32>
    %120 = vector.extract_strided_slice %115 {offsets = [0, 32], sizes = [1, 16], strides = [1, 1]} : vector<1x48xf32> to vector<1x16xf32>
    %121 = vector.extract_strided_slice %117 {offsets = [0, 0], sizes = [1, 16], strides = [1, 1]} : vector<1x48xf32> to vector<1x16xf32>
    %122 = vector.extract_strided_slice %117 {offsets = [0, 16], sizes = [1, 16], strides = [1, 1]} : vector<1x48xf32> to vector<1x16xf32>
    %123 = vector.extract_strided_slice %117 {offsets = [0, 32], sizes = [1, 16], strides = [1, 1]} : vector<1x48xf32> to vector<1x16xf32>
    %124 = arith.addf %118, %121 : vector<1x16xf32>
    %125 = arith.negf %124 : vector<1x16xf32>
    %126 = math.exp %125 : vector<1x16xf32>
    %cst_23 = arith.constant 1.000000e+00 : f32
    %127 = vector.broadcast %cst_23 : f32 to vector<1x16xf32>
    %128 = arith.addf %127, %126 : vector<1x16xf32>
    %129 = arith.divf %127, %128 : vector<1x16xf32>
    %130 = arith.addf %119, %122 : vector<1x16xf32>
    %131 = arith.negf %130 : vector<1x16xf32>
    %132 = math.exp %131 : vector<1x16xf32>
    %cst_24 = arith.constant 1.000000e+00 : f32
    %133 = vector.broadcast %cst_24 : f32 to vector<1x16xf32>
    %134 = arith.addf %133, %132 : vector<1x16xf32>
    %135 = arith.divf %133, %134 : vector<1x16xf32>
    %136 = arith.mulf %129, %123 : vector<1x16xf32>
    %137 = arith.addf %120, %136 : vector<1x16xf32>
    %138 = math.tanh %137 : vector<1x16xf32>
    %139 = arith.subf %113, %138 : vector<1x16xf32>
    %140 = arith.mulf %135, %139 : vector<1x16xf32>
    %141 = arith.addf %138, %140 : vector<1x16xf32>
    %142 = tpu.concatenate %141, %129, %135, %138 in 1 : vector<1x16xf32>, vector<1x16xf32>, vector<1x16xf32>, vector<1x16xf32> -> vector<1x64xf32>
    %c5 = arith.constant 5 : index
    %c0_25 = arith.constant 0 : index
    %143 = vector.load %arg1[%c5, %c0_25] : memref<8x48xf32, #tpu.memory_space<vmem>>, vector<1x48xf32>
    %cst_26 = arith.constant dense<0.000000e+00> : vector<1x48xf32>
    %144 = tpu.matmul %141, %0, %cst_26 {dimension_numbers = #tpu.dot_dimension_numbers<[1], [0], [0], [1], [0, 0, 1, 1], [], []>} : vector<1x16xf32>, vector<16x48xf32>, vector<1x48xf32> -> vector<1x48xf32>
    %145 = arith.addf %144, %1 : vector<1x48xf32>
    %146 = vector.extract_strided_slice %143 {offsets = [0, 0], sizes = [1, 16], strides = [1, 1]} : vector<1x48xf32> to vector<1x16xf32>
    %147 = vector.extract_strided_slice %143 {offsets = [0, 16], sizes = [1, 16], strides = [1, 1]} : vector<1x48xf32> to vector<1x16xf32>
    %148 = vector.extract_strided_slice %143 {offsets = [0, 32], sizes = [1, 16], strides = [1, 1]} : vector<1x48xf32> to vector<1x16xf32>
    %149 = vector.extract_strided_slice %145 {offsets = [0, 0], sizes = [1, 16], strides = [1, 1]} : vector<1x48xf32> to vector<1x16xf32>
    %150 = vector.extract_strided_slice %145 {offsets = [0, 16], sizes = [1, 16], strides = [1, 1]} : vector<1x48xf32> to vector<1x16xf32>
    %151 = vector.extract_strided_slice %145 {offsets = [0, 32], sizes = [1, 16], strides = [1, 1]} : vector<1x48xf32> to vector<1x16xf32>
    %152 = arith.addf %146, %149 : vector<1x16xf32>
    %153 = arith.negf %152 : vector<1x16xf32>
    %154 = math.exp %153 : vector<1x16xf32>
    %cst_27 = arith.constant 1.000000e+00 : f32
    %155 = vector.broadcast %cst_27 : f32 to vector<1x16xf32>
    %156 = arith.addf %155, %154 : vector<1x16xf32>
    %157 = arith.divf %155, %156 : vector<1x16xf32>
    %158 = arith.addf %147, %150 : vector<1x16xf32>
    %159 = arith.negf %158 : vector<1x16xf32>
    %160 = math.exp %159 : vector<1x16xf32>
    %cst_28 = arith.constant 1.000000e+00 : f32
    %161 = vector.broadcast %cst_28 : f32 to vector<1x16xf32>
    %162 = arith.addf %161, %160 : vector<1x16xf32>
    %163 = arith.divf %161, %162 : vector<1x16xf32>
    %164 = arith.mulf %157, %151 : vector<1x16xf32>
    %165 = arith.addf %148, %164 : vector<1x16xf32>
    %166 = math.tanh %165 : vector<1x16xf32>
    %167 = arith.subf %141, %166 : vector<1x16xf32>
    %168 = arith.mulf %163, %167 : vector<1x16xf32>
    %169 = arith.addf %166, %168 : vector<1x16xf32>
    %170 = tpu.concatenate %169, %157, %163, %166 in 1 : vector<1x16xf32>, vector<1x16xf32>, vector<1x16xf32>, vector<1x16xf32> -> vector<1x64xf32>
    %c6 = arith.constant 6 : index
    %c0_29 = arith.constant 0 : index
    %171 = vector.load %arg1[%c6, %c0_29] : memref<8x48xf32, #tpu.memory_space<vmem>>, vector<1x48xf32>
    %cst_30 = arith.constant dense<0.000000e+00> : vector<1x48xf32>
    %172 = tpu.matmul %169, %0, %cst_30 {dimension_numbers = #tpu.dot_dimension_numbers<[1], [0], [0], [1], [0, 0, 1, 1], [], []>} : vector<1x16xf32>, vector<16x48xf32>, vector<1x48xf32> -> vector<1x48xf32>
    %173 = arith.addf %172, %1 : vector<1x48xf32>
    %174 = vector.extract_strided_slice %171 {offsets = [0, 0], sizes = [1, 16], strides = [1, 1]} : vector<1x48xf32> to vector<1x16xf32>
    %175 = vector.extract_strided_slice %171 {offsets = [0, 16], sizes = [1, 16], strides = [1, 1]} : vector<1x48xf32> to vector<1x16xf32>
    %176 = vector.extract_strided_slice %171 {offsets = [0, 32], sizes = [1, 16], strides = [1, 1]} : vector<1x48xf32> to vector<1x16xf32>
    %177 = vector.extract_strided_slice %173 {offsets = [0, 0], sizes = [1, 16], strides = [1, 1]} : vector<1x48xf32> to vector<1x16xf32>
    %178 = vector.extract_strided_slice %173 {offsets = [0, 16], sizes = [1, 16], strides = [1, 1]} : vector<1x48xf32> to vector<1x16xf32>
    %179 = vector.extract_strided_slice %173 {offsets = [0, 32], sizes = [1, 16], strides = [1, 1]} : vector<1x48xf32> to vector<1x16xf32>
    %180 = arith.addf %174, %177 : vector<1x16xf32>
    %181 = arith.negf %180 : vector<1x16xf32>
    %182 = math.exp %181 : vector<1x16xf32>
    %cst_31 = arith.constant 1.000000e+00 : f32
    %183 = vector.broadcast %cst_31 : f32 to vector<1x16xf32>
    %184 = arith.addf %183, %182 : vector<1x16xf32>
    %185 = arith.divf %183, %184 : vector<1x16xf32>
    %186 = arith.addf %175, %178 : vector<1x16xf32>
    %187 = arith.negf %186 : vector<1x16xf32>
    %188 = math.exp %187 : vector<1x16xf32>
    %cst_32 = arith.constant 1.000000e+00 : f32
    %189 = vector.broadcast %cst_32 : f32 to vector<1x16xf32>
    %190 = arith.addf %189, %188 : vector<1x16xf32>
    %191 = arith.divf %189, %190 : vector<1x16xf32>
    %192 = arith.mulf %185, %179 : vector<1x16xf32>
    %193 = arith.addf %176, %192 : vector<1x16xf32>
    %194 = math.tanh %193 : vector<1x16xf32>
    %195 = arith.subf %169, %194 : vector<1x16xf32>
    %196 = arith.mulf %191, %195 : vector<1x16xf32>
    %197 = arith.addf %194, %196 : vector<1x16xf32>
    %198 = tpu.concatenate %197, %185, %191, %194 in 1 : vector<1x16xf32>, vector<1x16xf32>, vector<1x16xf32>, vector<1x16xf32> -> vector<1x64xf32>
    %c7 = arith.constant 7 : index
    %c0_33 = arith.constant 0 : index
    %199 = vector.load %arg1[%c7, %c0_33] : memref<8x48xf32, #tpu.memory_space<vmem>>, vector<1x48xf32>
    %cst_34 = arith.constant dense<0.000000e+00> : vector<1x48xf32>
    %200 = tpu.matmul %197, %0, %cst_34 {dimension_numbers = #tpu.dot_dimension_numbers<[1], [0], [0], [1], [0, 0, 1, 1], [], []>} : vector<1x16xf32>, vector<16x48xf32>, vector<1x48xf32> -> vector<1x48xf32>
    %201 = arith.addf %200, %1 : vector<1x48xf32>
    %202 = vector.extract_strided_slice %199 {offsets = [0, 0], sizes = [1, 16], strides = [1, 1]} : vector<1x48xf32> to vector<1x16xf32>
    %203 = vector.extract_strided_slice %199 {offsets = [0, 16], sizes = [1, 16], strides = [1, 1]} : vector<1x48xf32> to vector<1x16xf32>
    %204 = vector.extract_strided_slice %199 {offsets = [0, 32], sizes = [1, 16], strides = [1, 1]} : vector<1x48xf32> to vector<1x16xf32>
    %205 = vector.extract_strided_slice %201 {offsets = [0, 0], sizes = [1, 16], strides = [1, 1]} : vector<1x48xf32> to vector<1x16xf32>
    %206 = vector.extract_strided_slice %201 {offsets = [0, 16], sizes = [1, 16], strides = [1, 1]} : vector<1x48xf32> to vector<1x16xf32>
    %207 = vector.extract_strided_slice %201 {offsets = [0, 32], sizes = [1, 16], strides = [1, 1]} : vector<1x48xf32> to vector<1x16xf32>
    %208 = arith.addf %202, %205 : vector<1x16xf32>
    %209 = arith.negf %208 : vector<1x16xf32>
    %210 = math.exp %209 : vector<1x16xf32>
    %cst_35 = arith.constant 1.000000e+00 : f32
    %211 = vector.broadcast %cst_35 : f32 to vector<1x16xf32>
    %212 = arith.addf %211, %210 : vector<1x16xf32>
    %213 = arith.divf %211, %212 : vector<1x16xf32>
    %214 = arith.addf %203, %206 : vector<1x16xf32>
    %215 = arith.negf %214 : vector<1x16xf32>
    %216 = math.exp %215 : vector<1x16xf32>
    %cst_36 = arith.constant 1.000000e+00 : f32
    %217 = vector.broadcast %cst_36 : f32 to vector<1x16xf32>
    %218 = arith.addf %217, %216 : vector<1x16xf32>
    %219 = arith.divf %217, %218 : vector<1x16xf32>
    %220 = arith.mulf %213, %207 : vector<1x16xf32>
    %221 = arith.addf %204, %220 : vector<1x16xf32>
    %222 = math.tanh %221 : vector<1x16xf32>
    %223 = arith.subf %197, %222 : vector<1x16xf32>
    %224 = arith.mulf %219, %223 : vector<1x16xf32>
    %225 = arith.addf %222, %224 : vector<1x16xf32>
    %226 = tpu.concatenate %225, %213, %219, %222 in 1 : vector<1x16xf32>, vector<1x16xf32>, vector<1x16xf32>, vector<1x16xf32> -> vector<1x64xf32>
    %227 = tpu.concatenate %30, %58, %86, %114, %142, %170, %198, %226 in 0 : vector<1x64xf32>, vector<1x64xf32>, vector<1x64xf32>, vector<1x64xf32>, vector<1x64xf32>, vector<1x64xf32>, vector<1x64xf32>, vector<1x64xf32> -> vector<8x64xf32>
    %c0_37 = arith.constant 0 : index
    %c0_38 = arith.constant 0 : index
    %228 = vector.load %arg5[%c0_37, %c0_38] : memref<8x64xf32, #tpu.memory_space<vmem>>, vector<8x64xf32>
    tpu.vector_store %arg5[%c0_37, %c0_38], %227 {strides = array<i32>} : memref<8x64xf32, #tpu.memory_space<vmem>>, vector<8x64xf32>,
    return
  }
  func.func @transform_0(%arg0: i32) -> (i32, i32) {
    %c0_i32 = arith.constant 0 : i32
    %c0_i32_0 = arith.constant 0 : i32
    %c0_i32_1 = arith.constant 0 : i32
    return %c0_i32, %c0_i32_0 : i32, i32
  }
  func.func @transform_1(%arg0: i32) -> (i32, i32) {
    %c0_i32 = arith.constant 0 : i32
    %c0_i32_0 = arith.constant 0 : i32
    %c0_i32_1 = arith.constant 0 : i32
    return %c0_i32, %c0_i32_0 : i32, i32
  }
  func.func @transform_2(%arg0: i32) -> (i32, i32) {
    %c0_i32 = arith.constant 0 : i32
    %c0_i32_0 = arith.constant 0 : i32
    %c0_i32_1 = arith.constant 0 : i32
    return %c0_i32, %c0_i32_0 : i32, i32
  }
  func.func @transform_3(%arg0: i32) -> (i32, i32) {
    %c0_i32 = arith.constant 0 : i32
    %c0_i32_0 = arith.constant 0 : i32
    %c0_i32_1 = arith.constant 0 : i32
    return %c0_i32, %c0_i32_0 : i32, i32
  }
  func.func @transform_4(%arg0: i32) -> (i32, i32) {
    %c0_i32 = arith.constant 0 : i32
    %c0_i32_0 = arith.constant 0 : i32
    %c0_i32_1 = arith.constant 0 : i32
    return %c0_i32, %c0_i32_0 : i32, i32
  }
}

</mosaic_0001>

<llo_original>
// kernel: tpu_custom_call.1
$region0: #{tpu_custom_call.1}
  #allocation0 [shape = 'u32[]', space=smem, size = 0x4, offset = 0x4, fixed_abs, tag = 'smem constant byte address 0x4 - core index']
  #allocation1 [shape = 'u32[72,128]{1,0:T(1,128)}', space=vmem, size = 0x9000, scoped, tag = 'internal scratch']
  %s0 = inlined_call_operand.hbm [shape: f32[8,48], index: 0, kind: input, shape index: {}]
  %s1 = inlined_call_operand.hbm [shape: f32[16,48], index: 1, kind: input, shape index: {}]
  %s2 = inlined_call_operand.vmem [shape: f32[1,48], index: 2, kind: input, shape index: {}]
  %s3 = inlined_call_operand.vmem [shape: f32[1,16], index: 3, kind: input, shape index: {}]
  %s4 = inlined_call_operand.hbm [shape: f32[8,64], index: 4, kind: output, shape index: {}]
  %s5 = sld [smem:[#allocation0]]
  $region34: #{tpu_custom_call.1} parent=0
    _
  %s7 = ssub.s32 1, %s5
  %s8 = scalar_select 0, %s7, %s5
  $region1: #{tpu_custom_call.1} parent=0
    #allocation2 [shape = 'u8[4096]{0}', space=vmem, size = 0x1000, scoped, tag = 'input window, operand 0, single buffered']
    #allocation3 [shape = 's32[1]{0}', space=sflag, size = 0x4, scoped, tag = 'scoped memory for tpu_custom_call.1']
    #allocation4 [shape = 's32[1]{0}', space=sflag, size = 0x4, scoped, tag = 'scoped memory for tpu_custom_call.1']
    #allocation5 [shape = 'u8[8192]{0}', space=vmem, size = 0x2000, scoped, tag = 'input window, operand 1, single buffered']
    #allocation6 [shape = 's32[1]{0}', space=sflag, size = 0x4, scoped, tag = 'scoped memory for tpu_custom_call.1']
    #allocation7 [shape = 'u8[4096]{0}', space=vmem, size = 0x1000, scoped, tag = 'output window, operand 0, single buffered']
    %9 = vsyncpa [#allocation3], 0
    %10 = vsyncpa [#allocation6], 0
    %11 = vsyncpa [#allocation4], 0
    // Predicated region
    $region2: #{tpu_custom_call.1} parent=1 // pred_check
      _
    $region3: #{tpu_custom_call.1} parent=1 // pred_check_branch
      %13 = sbr.rel (0) target = $region5
    $region4: #{tpu_custom_call.1} parent=1 // pred_region
      %15 = vsyncadd [#allocation3], 0
      %s17 = sshll.u32 %s0, 4
      %s18 = int_to_ptr.hbm [resolvable:$true] %s17
      %s19 = sshll.u32 [#allocation2], 4
      %s20 = int_to_ptr.vmem [resolvable:$true] %s19
      %22 = dma.hbm_to_vmem [thread:$0]  %s18, 128, %s20, [#allocation3]
    $region5: #{tpu_custom_call.1} parent=1 // pred_fallthru
      _
    // Predicated region
    $region6: #{tpu_custom_call.1} parent=1 // pred_check
      _
    $region7: #{tpu_custom_call.1} parent=1 // pred_check_branch
      %24 = sbr.rel (0) target = $region9
    $region8: #{tpu_custom_call.1} parent=1 // pred_region
      %26 = vsyncadd [#allocation6], 0
      %s27 = sshll.u32 %s1, 4
      %s28 = int_to_ptr.hbm [resolvable:$true] %s27
      %s29 = sshll.u32 [#allocation5], 4
      %s30 = int_to_ptr.vmem [resolvable:$true] %s29
      %35 = dma.hbm_to_vmem [thread:$0]  %s28, 256, %s30, [#allocation6], 128, 128, 8
    $region9: #{tpu_custom_call.1} parent=1 // pred_fallthru
      _
    // Predicated region
    $region10: #{tpu_custom_call.1} parent=1 // pred_check
      _
    $region11: #{tpu_custom_call.1} parent=1 // pred_check_branch
      %37 = sbr.rel (0) target = $region13
    $region12: #{tpu_custom_call.1} parent=1 // pred_region
      _
    $region13: #{tpu_custom_call.1} parent=1 // pred_fallthru
      _
    // Predicated region
    $region14: #{tpu_custom_call.1} parent=1 // pred_check
      _
    $region15: #{tpu_custom_call.1} parent=1 // pred_check_branch
      %39 = sbr.rel (0) target = $region17
    $region16: #{tpu_custom_call.1} parent=1 // pred_region
      _
    $region17: #{tpu_custom_call.1} parent=1 // pred_fallthru
      _
    // Predicated region
    $region18: #{tpu_custom_call.1} parent=1 // pred_check
      _
    $region19: #{tpu_custom_call.1} parent=1 // pred_check_branch
      %41 = sbr.rel (0) target = $region21
    $region20: #{tpu_custom_call.1} parent=1 // pred_region
      %43 = dma.done [#allocation3], 128
    $region21: #{tpu_custom_call.1} parent=1 // pred_fallthru
      _
    // Predicated region
    $region22: #{tpu_custom_call.1} parent=1 // pred_check
      _
    $region23: #{tpu_custom_call.1} parent=1 // pred_check_branch
      %45 = sbr.rel (0) target = $region25
    $region24: #{tpu_custom_call.1} parent=1 // pred_region
      %47 = dma.done [#allocation6], 256
    $region25: #{tpu_custom_call.1} parent=1 // pred_fallthru
      _
    %v48 = vld [vmem:[#allocation5] sm:$0xff]
    %v49 = vld [vmem:[#allocation5 + $0x8] sm:$0xff]
    %v50 = vld [vmem:[%s2] sm:$0x1]
    %v51 = vld [vmem:[%s3] sm:$0x1]
    %v52 = vld [vmem:[#allocation2] sm:$0x1]
    %vm53 = vcmask 130048
    %v55 = vsel %vm53, %v51, 0
    %57 = vmatpush.msra.mxu0 0.0
    %58 = vmatpush.msra.mxu0 0.0
    %59 = vmatpush.msra.mxu0 0.0
    %60 = vmatpush.msra.mxu0 0.0
    %61 = vmatpush.msra.mxu0 0.0
    %62 = vmatpush.msra.mxu0 0.0
    %63 = vmatpush.msra.mxu0 0.0
    %64 = vmatpush.msra.mxu0 0.0
    %65 = vmatpush.msra.mxu0 0.0
    %66 = vmatpush.msra.mxu0 0.0
    %67 = vmatpush.msra.mxu0 0.0
    %68 = vmatpush.msra.mxu0 0.0
    %69 = vmatpush.msra.mxu0 0.0
    %70 = vmatpush.msra.mxu0 0.0
    %71 = vmatpush.msra.mxu0 %v49
    %72 = vmatpush.msra.mxu0 %v48
    %73 = vmatmul.f32.gmra.mxu0 %v55
    %v74 = vpop.f32.mrf.mxu0
    %v75 = vadd.f32 %v50, %v74
    %76 = vdwg.mxu0
    %v77 = vadd.f32 %v52, %v75
    %v78 = vxor.u32 %v77, 2147483648
    %v79 = vmul.f32 %v78, 1.442695
    %v80 = vpow.pop %v79
    %v81 = vadd.f32 %v80, 1.0
    %v82 = vrcp.pop %v81
    %v83 = vmul.f32 %v81, %v82
    %v84 = vsub.f32 1.0, %v83
    %v85 = vmul.f32 %v82, %v84
    %v86 = vadd.f32 %v82, %v85
    %vm87 = vweird.f32 %v81
    %vm88 = vweird.f32 %v82
    %vm89 = vmor %vm87, %vm88
    %v90 = vsel %vm89, %v82, %v86
    %v91 = vand.u32 2147483647, %v81
    %vm92 = vcmp.eq.f32.partialorder %v91, 8.507059e+37
    %v93 = vand.u32 %v81, 2147483648
    %v94 = vor.u32 1.1754944e-38, %v93
    %v95 = vsel %vm92, %v94, %v90
    %v96 = vmul.f32 1.0, %v95
    %98 = vrot.lane.b32.xlu0 %v75, 96
    %v99 = vpop.permute.xlu0 %98
    %v101 = vmul.f32 %v96, %v99
    %103 = vrot.lane.b32.xlu0 %v101, 32
    %v104 = vpop.permute.xlu0 %103
    %v106 = vadd.f32 %v52, %v104
    %v107 = vtanh.pop %v106
    %109 = vrot.lane.b32.xlu0 %v107, 96
    %v110 = vpop.permute.xlu0 %109
    %v112 = vsub.f32 %v51, %v110
    %v114 = vperm.slane %v112, 0
    %115 = vrot.lane.b32.xlu0 %v114, 16
    %v116 = vpop.permute.xlu0 %115
    %v118 = vmul.f32 %v96, %v116
    %120 = vrot.lane.b32.xlu0 %v118, 16
    %v121 = vpop.permute.xlu0 %120
    %v123 = vadd.f32 %v107, %v121
    %125 = vrot.lane.b32.xlu0 %v123, 96
    %v126 = vpop.permute.xlu0 %125
    %129 = vrot.lane.b32.xlu0 %v96, 16
    %v130 = vpop.permute.xlu0 %129
    %132 = vrot.lane.b32.xlu0 %v107, 16
    %v133 = vpop.permute.xlu0 %132
    %v135 = vsel %vm53, %v126, %v130
    %vm136 = vcmask 261120
    %v137 = vsel %vm136, %v135, %v130
    %vm138 = vcmask 392192
    %v139 = vsel %vm138, %v137, %v133
    %v140 = vld [vmem:[#allocation2 + $0x1] sm:$0x1]
    %v141 = vsel %vm53, %v126, 0
    %143 = vmatpush.msra.mxu0 0.0
    %144 = vmatpush.msra.mxu0 0.0
    %145 = vmatpush.msra.mxu0 0.0
    %146 = vmatpush.msra.mxu0 0.0
    %147 = vmatpush.msra.mxu0 0.0
    %148 = vmatpush.msra.mxu0 0.0
    %149 = vmatpush.msra.mxu0 0.0
    %150 = vmatpush.msra.mxu0 0.0
    %151 = vmatpush.msra.mxu0 0.0
    %152 = vmatpush.msra.mxu0 0.0
    %153 = vmatpush.msra.mxu0 0.0
    %154 = vmatpush.msra.mxu0 0.0
    %155 = vmatpush.msra.mxu0 0.0
    %156 = vmatpush.msra.mxu0 0.0
    %157 = vmatpush.msra.mxu0 %v49
    %158 = vmatpush.msra.mxu0 %v48
    %159 = vmatmul.f32.gmra.mxu0 %v141
    %v160 = vpop.f32.mrf.mxu0
    %v161 = vadd.f32 %v50, %v160
    %162 = vdwg.mxu0
    %v163 = vadd.f32 %v140, %v161
    %v164 = vxor.u32 %v163, 2147483648
    %v165 = vmul.f32 %v164, 1.442695
    %v166 = vpow.pop %v165
    %v167 = vadd.f32 %v166, 1.0
    %v168 = vrcp.pop %v167
    %v169 = vmul.f32 %v167, %v168
    %v170 = vsub.f32 1.0, %v169
    %v171 = vmul.f32 %v168, %v170
    %v172 = vadd.f32 %v168, %v171
    %vm173 = vweird.f32 %v167
    %vm174 = vweird.f32 %v168
    %vm175 = vmor %vm173, %vm174
    %v176 = vsel %vm175, %v168, %v172
    %v177 = vand.u32 2147483647, %v167
    %vm178 = vcmp.eq.f32.partialorder %v177, 8.507059e+37
    %v179 = vand.u32 %v167, 2147483648
    %v180 = vor.u32 1.1754944e-38, %v179
    %v181 = vsel %vm178, %v180, %v176
    %v182 = vmul.f32 1.0, %v181
    %184 = vrot.lane.b32.xlu0 %v161, 96
    %v185 = vpop.permute.xlu0 %184
    %v187 = vmul.f32 %v182, %v185
    %189 = vrot.lane.b32.xlu0 %v187, 32
    %v190 = vpop.permute.xlu0 %189
    %v192 = vadd.f32 %v140, %v190
    %v193 = vtanh.pop %v192
    %v194 = vsub.f32 %v123, %v193
    %196 = vrot.lane.b32.xlu0 %v194, 112
    %v197 = vpop.permute.xlu0 %196
    %v199 = vmul.f32 %v182, %v197
    %201 = vrot.lane.b32.xlu0 %v199, 16
    %v202 = vpop.permute.xlu0 %201
    %v204 = vadd.f32 %v193, %v202
    %206 = vrot.lane.b32.xlu0 %v204, 96
    %v207 = vpop.permute.xlu0 %206
    %210 = vrot.lane.b32.xlu0 %v182, 16
    %v211 = vpop.permute.xlu0 %210
    %214 = vrot.lane.b32.xlu0 %v193, 16
    %v215 = vpop.permute.xlu0 %214
    %v217 = vsel %vm53, %v207, %v211
    %v218 = vsel %vm136, %v217, %v211
    %v219 = vsel %vm138, %v218, %v215
    %v220 = vld [vmem:[#allocation2 + $0x2] sm:$0x1]
    %v221 = vsel %vm53, %v207, 0
    %223 = vmatpush.msra.mxu0 0.0
    %224 = vmatpush.msra.mxu0 0.0
    %225 = vmatpush.msra.mxu0 0.0
    %226 = vmatpush.msra.mxu0 0.0
    %227 = vmatpush.msra.mxu0 0.0
    %228 = vmatpush.msra.mxu0 0.0
    %229 = vmatpush.msra.mxu0 0.0
    %230 = vmatpush.msra.mxu0 0.0
    %231 = vmatpush.msra.mxu0 0.0
    %232 = vmatpush.msra.mxu0 0.0
    %233 = vmatpush.msra.mxu0 0.0
    %234 = vmatpush.msra.mxu0 0.0
    %235 = vmatpush.msra.mxu0 0.0
    %236 = vmatpush.msra.mxu0 0.0
    %237 = vmatpush.msra.mxu0 %v49
    %238 = vmatpush.msra.mxu0 %v48
    %239 = vmatmul.f32.gmra.mxu0 %v221
    %v240 = vpop.f32.mrf.mxu0
    %v241 = vadd.f32 %v50, %v240
    %242 = vdwg.mxu0
    %v243 = vadd.f32 %v220, %v241
    %v244 = vxor.u32 %v243, 2147483648
    %v245 = vmul.f32 %v244, 1.442695
    %v246 = vpow.pop %v245
    %v247 = vadd.f32 %v246, 1.0
    %v248 = vrcp.pop %v247
    %v249 = vmul.f32 %v247, %v248
    %v250 = vsub.f32 1.0, %v249
    %v251 = vmul.f32 %v248, %v250
    %v252 = vadd.f32 %v248, %v251
    %vm253 = vweird.f32 %v247
    %vm254 = vweird.f32 %v248
    %vm255 = vmor %vm253, %vm254
    %v256 = vsel %vm255, %v248, %v252
    %v257 = vand.u32 2147483647, %v247
    %vm258 = vcmp.eq.f32.partialorder %v257, 8.507059e+37
    %v259 = vand.u32 %v247, 2147483648
    %v260 = vor.u32 1.1754944e-38, %v259
    %v261 = vsel %vm258, %v260, %v256
    %v262 = vmul.f32 1.0, %v261
    %264 = vrot.lane.b32.xlu0 %v241, 96
    %v265 = vpop.permute.xlu0 %264
    %v267 = vmul.f32 %v262, %v265
    %269 = vrot.lane.b32.xlu0 %v267, 32
    %v270 = vpop.permute.xlu0 %269
    %v272 = vadd.f32 %v220, %v270
    %v273 = vtanh.pop %v272
    %v274 = vsub.f32 %v204, %v273
    %276 = vrot.lane.b32.xlu0 %v274, 112
    %v277 = vpop.permute.xlu0 %276
    %v279 = vmul.f32 %v262, %v277
    %281 = vrot.lane.b32.xlu0 %v279, 16
    %v282 = vpop.permute.xlu0 %281
    %v284 = vadd.f32 %v273, %v282
    %286 = vrot.lane.b32.xlu0 %v284, 96
    %v287 = vpop.permute.xlu0 %286
    %290 = vrot.lane.b32.xlu0 %v262, 16
    %v291 = vpop.permute.xlu0 %290
    %294 = vrot.lane.b32.xlu0 %v273, 16
    %v295 = vpop.permute.xlu0 %294
    %v297 = vsel %vm53, %v287, %v291
    %v298 = vsel %vm136, %v297, %v291
    %v299 = vsel %vm138, %v298, %v295
    %v300 = vld [vmem:[#allocation2 + $0x3] sm:$0x1]
    %v301 = vsel %vm53, %v287, 0
    %303 = vmatpush.msra.mxu0 0.0
    %304 = vmatpush.msra.mxu0 0.0
    %305 = vmatpush.msra.mxu0 0.0
    %306 = vmatpush.msra.mxu0 0.0
    %307 = vmatpush.msra.mxu0 0.0
    %308 = vmatpush.msra.mxu0 0.0
    %309 = vmatpush.msra.mxu0 0.0
    %310 = vmatpush.msra.mxu0 0.0
    %311 = vmatpush.msra.mxu0 0.0
    %312 = vmatpush.msra.mxu0 0.0
    %313 = vmatpush.msra.mxu0 0.0
    %314 = vmatpush.msra.mxu0 0.0
    %315 = vmatpush.msra.mxu0 0.0
    %316 = vmatpush.msra.mxu0 0.0
    %317 = vmatpush.msra.mxu0 %v49
    %318 = vmatpush.msra.mxu0 %v48
    %319 = vmatmul.f32.gmra.mxu0 %v301
    %v320 = vpop.f32.mrf.mxu0
    %v321 = vadd.f32 %v50, %v320
    %322 = vdwg.mxu0
    %v323 = vadd.f32 %v300, %v321
    %v324 = vxor.u32 %v323, 2147483648
    %v325 = vmul.f32 %v324, 1.442695
    %v326 = vpow.pop %v325
    %v327 = vadd.f32 %v326, 1.0
    %v328 = vrcp.pop %v327
    %v329 = vmul.f32 %v327, %v328
    %v330 = vsub.f32 1.0, %v329
    %v331 = vmul.f32 %v328, %v330
    %v332 = vadd.f32 %v328, %v331
    %vm333 = vweird.f32 %v327
    %vm334 = vweird.f32 %v328
    %vm335 = vmor %vm333, %vm334
    %v336 = vsel %vm335, %v328, %v332
    %v337 = vand.u32 2147483647, %v327
    %vm338 = vcmp.eq.f32.partialorder %v337, 8.507059e+37
    %v339 = vand.u32 %v327, 2147483648
    %v340 = vor.u32 1.1754944e-38, %v339
    %v341 = vsel %vm338, %v340, %v336
    %v342 = vmul.f32 1.0, %v341
    %344 = vrot.lane.b32.xlu0 %v321, 96
    %v345 = vpop.permute.xlu0 %344
    %v347 = vmul.f32 %v342, %v345
    %349 = vrot.lane.b32.xlu0 %v347, 32
    %v350 = vpop.permute.xlu0 %349
    %v352 = vadd.f32 %v300, %v350
    %v353 = vtanh.pop %v352
    %v354 = vsub.f32 %v284, %v353
    %356 = vrot.lane.b32.xlu0 %v354, 112
    %v357 = vpop.permute.xlu0 %356
    %v359 = vmul.f32 %v342, %v357
    %361 = vrot.lane.b32.xlu0 %v359, 16
    %v362 = vpop.permute.xlu0 %361
    %v364 = vadd.f32 %v353, %v362
    %366 = vrot.lane.b32.xlu0 %v364, 96
    %v367 = vpop.permute.xlu0 %366
    %370 = vrot.lane.b32.xlu0 %v342, 16
    %v371 = vpop.permute.xlu0 %370
    %374 = vrot.lane.b32.xlu0 %v353, 16
    %v375 = vpop.permute.xlu0 %374
    %v377 = vsel %vm53, %v367, %v371
    %v378 = vsel %vm136, %v377, %v371
    %v379 = vsel %vm138, %v378, %v375
    %v380 = vld [vmem:[#allocation2 + $0x4] sm:$0x1]
    %v381 = vsel %vm53, %v367, 0
    %383 = vmatpush.msra.mxu0 0.0
    %384 = vmatpush.msra.mxu0 0.0
    %385 = vmatpush.msra.mxu0 0.0
    %386 = vmatpush.msra.mxu0 0.0
    %387 = vmatpush.msra.mxu0 0.0
    %388 = vmatpush.msra.mxu0 0.0
    %389 = vmatpush.msra.mxu0 0.0
    %390 = vmatpush.msra.mxu0 0.0
    %391 = vmatpush.msra.mxu0 0.0
    %392 = vmatpush.msra.mxu0 0.0
    %393 = vmatpush.msra.mxu0 0.0
    %394 = vmatpush.msra.mxu0 0.0
    %395 = vmatpush.msra.mxu0 0.0
    %396 = vmatpush.msra.mxu0 0.0
    %397 = vmatpush.msra.mxu0 %v49
    %398 = vmatpush.msra.mxu0 %v48
    %399 = vmatmul.f32.gmra.mxu0 %v381
    %v400 = vpop.f32.mrf.mxu0
    %v401 = vadd.f32 %v50, %v400
    %402 = vdwg.mxu0
    %v403 = vadd.f32 %v380, %v401
    %v404 = vxor.u32 %v403, 2147483648
    %v405 = vmul.f32 %v404, 1.442695
    %v406 = vpow.pop %v405
    %v407 = vadd.f32 %v406, 1.0
    %v408 = vrcp.pop %v407
    %v409 = vmul.f32 %v407, %v408
    %v410 = vsub.f32 1.0, %v409
    %v411 = vmul.f32 %v408, %v410
    %v412 = vadd.f32 %v408, %v411
    %vm413 = vweird.f32 %v407
    %vm414 = vweird.f32 %v408
    %vm415 = vmor %vm413, %vm414
    %v416 = vsel %vm415, %v408, %v412
    %v417 = vand.u32 2147483647, %v407
    %vm418 = vcmp.eq.f32.partialorder %v417, 8.507059e+37
    %v419 = vand.u32 %v407, 2147483648
    %v420 = vor.u32 1.1754944e-38, %v419
    %v421 = vsel %vm418, %v420, %v416
    %v422 = vmul.f32 1.0, %v421
    %424 = vrot.lane.b32.xlu0 %v401, 96
    %v425 = vpop.permute.xlu0 %424
    %v427 = vmul.f32 %v422, %v425
    %429 = vrot.lane.b32.xlu0 %v427, 32
    %v430 = vpop.permute.xlu0 %429
    %v432 = vadd.f32 %v380, %v430
    %v433 = vtanh.pop %v432
    %v434 = vsub.f32 %v364, %v433
    %436 = vrot.lane.b32.xlu0 %v434, 112
    %v437 = vpop.permute.xlu0 %436
    %v439 = vmul.f32 %v422, %v437
    %441 = vrot.lane.b32.xlu0 %v439, 16
    %v442 = vpop.permute.xlu0 %441
    %v444 = vadd.f32 %v433, %v442
    %446 = vrot.lane.b32.xlu0 %v444, 96
    %v447 = vpop.permute.xlu0 %446
    %450 = vrot.lane.b32.xlu0 %v422, 16
    %v451 = vpop.permute.xlu0 %450
    %454 = vrot.lane.b32.xlu0 %v433, 16
    %v455 = vpop.permute.xlu0 %454
    %v457 = vsel %vm53, %v447, %v451
    %v458 = vsel %vm136, %v457, %v451
    %v459 = vsel %vm138, %v458, %v455
    %v460 = vld [vmem:[#allocation2 + $0x5] sm:$0x1]
    %v461 = vsel %vm53, %v447, 0
    %463 = vmatpush.msra.mxu0 0.0
    %464 = vmatpush.msra.mxu0 0.0
    %465 = vmatpush.msra.mxu0 0.0
    %466 = vmatpush.msra.mxu0 0.0
    %467 = vmatpush.msra.mxu0 0.0
    %468 = vmatpush.msra.mxu0 0.0
    %469 = vmatpush.msra.mxu0 0.0
    %470 = vmatpush.msra.mxu0 0.0
    %471 = vmatpush.msra.mxu0 0.0
    %472 = vmatpush.msra.mxu0 0.0
    %473 = vmatpush.msra.mxu0 0.0
    %474 = vmatpush.msra.mxu0 0.0
    %475 = vmatpush.msra.mxu0 0.0
    %476 = vmatpush.msra.mxu0 0.0
    %477 = vmatpush.msra.mxu0 %v49
    %478 = vmatpush.msra.mxu0 %v48
    %479 = vmatmul.f32.gmra.mxu0 %v461
    %v480 = vpop.f32.mrf.mxu0
    %v481 = vadd.f32 %v50, %v480
    %482 = vdwg.mxu0
    %v483 = vadd.f32 %v460, %v481
    %v484 = vxor.u32 %v483, 2147483648
    %v485 = vmul.f32 %v484, 1.442695
    %v486 = vpow.pop %v485
    %v487 = vadd.f32 %v486, 1.0
    %v488 = vrcp.pop %v487
    %v489 = vmul.f32 %v487, %v488
    %v490 = vsub.f32 1.0, %v489
    %v491 = vmul.f32 %v488, %v490
    %v492 = vadd.f32 %v488, %v491
    %vm493 = vweird.f32 %v487
    %vm494 = vweird.f32 %v488
    %vm495 = vmor %vm493, %vm494
    %v496 = vsel %vm495, %v488, %v492
    %v497 = vand.u32 2147483647, %v487
    %vm498 = vcmp.eq.f32.partialorder %v497, 8.507059e+37
    %v499 = vand.u32 %v487, 2147483648
    %v500 = vor.u32 1.1754944e-38, %v499
    %v501 = vsel %vm498, %v500, %v496
    %v502 = vmul.f32 1.0, %v501
    %504 = vrot.lane.b32.xlu0 %v481, 96
    %v505 = vpop.permute.xlu0 %504
    %v507 = vmul.f32 %v502, %v505
    %509 = vrot.lane.b32.xlu0 %v507, 32
    %v510 = vpop.permute.xlu0 %509
    %v512 = vadd.f32 %v460, %v510
    %v513 = vtanh.pop %v512
    %v514 = vsub.f32 %v444, %v513
    %516 = vrot.lane.b32.xlu0 %v514, 112
    %v517 = vpop.permute.xlu0 %516
    %v519 = vmul.f32 %v502, %v517
    %521 = vrot.lane.b32.xlu0 %v519, 16
    %v522 = vpop.permute.xlu0 %521
    %v524 = vadd.f32 %v513, %v522
    %526 = vrot.lane.b32.xlu0 %v524, 96
    %v527 = vpop.permute.xlu0 %526
    %530 = vrot.lane.b32.xlu0 %v502, 16
    %v531 = vpop.permute.xlu0 %530
    %534 = vrot.lane.b32.xlu0 %v513, 16
    %v535 = vpop.permute.xlu0 %534
    %v537 = vsel %vm53, %v527, %v531
    %v538 = vsel %vm136, %v537, %v531
    %v539 = vsel %vm138, %v538, %v535
    %v540 = vld [vmem:[#allocation2 + $0x6] sm:$0x1]
    %v541 = vsel %vm53, %v527, 0
    %543 = vmatpush.msra.mxu0 0.0
    %544 = vmatpush.msra.mxu0 0.0
    %545 = vmatpush.msra.mxu0 0.0
    %546 = vmatpush.msra.mxu0 0.0
    %547 = vmatpush.msra.mxu0 0.0
    %548 = vmatpush.msra.mxu0 0.0
    %549 = vmatpush.msra.mxu0 0.0
    %550 = vmatpush.msra.mxu0 0.0
    %551 = vmatpush.msra.mxu0 0.0
    %552 = vmatpush.msra.mxu0 0.0
    %553 = vmatpush.msra.mxu0 0.0
    %554 = vmatpush.msra.mxu0 0.0
    %555 = vmatpush.msra.mxu0 0.0
    %556 = vmatpush.msra.mxu0 0.0
    %557 = vmatpush.msra.mxu0 %v49
    %558 = vmatpush.msra.mxu0 %v48
    %559 = vmatmul.f32.gmra.mxu0 %v541
    %v560 = vpop.f32.mrf.mxu0
    %v561 = vadd.f32 %v50, %v560
    %562 = vdwg.mxu0
    %v563 = vadd.f32 %v540, %v561
    %v564 = vxor.u32 %v563, 2147483648
    %v565 = vmul.f32 %v564, 1.442695
    %v566 = vpow.pop %v565
    %v567 = vadd.f32 %v566, 1.0
    %v568 = vrcp.pop %v567
    %v569 = vmul.f32 %v567, %v568
    %v570 = vsub.f32 1.0, %v569
    %v571 = vmul.f32 %v568, %v570
    %v572 = vadd.f32 %v568, %v571
    %vm573 = vweird.f32 %v567
    %vm574 = vweird.f32 %v568
    %vm575 = vmor %vm573, %vm574
    %v576 = vsel %vm575, %v568, %v572
    %v577 = vand.u32 2147483647, %v567
    %vm578 = vcmp.eq.f32.partialorder %v577, 8.507059e+37
    %v579 = vand.u32 %v567, 2147483648
    %v580 = vor.u32 1.1754944e-38, %v579
    %v581 = vsel %vm578, %v580, %v576
    %v582 = vmul.f32 1.0, %v581
    %584 = vrot.lane.b32.xlu0 %v561, 96
    %v585 = vpop.permute.xlu0 %584
    %v587 = vmul.f32 %v582, %v585
    %589 = vrot.lane.b32.xlu0 %v587, 32
    %v590 = vpop.permute.xlu0 %589
    %v592 = vadd.f32 %v540, %v590
    %v593 = vtanh.pop %v592
    %v594 = vsub.f32 %v524, %v593
    %596 = vrot.lane.b32.xlu0 %v594, 112
    %v597 = vpop.permute.xlu0 %596
    %v599 = vmul.f32 %v582, %v597
    %601 = vrot.lane.b32.xlu0 %v599, 16
    %v602 = vpop.permute.xlu0 %601
    %v604 = vadd.f32 %v593, %v602
    %606 = vrot.lane.b32.xlu0 %v604, 96
    %v607 = vpop.permute.xlu0 %606
    %610 = vrot.lane.b32.xlu0 %v582, 16
    %v611 = vpop.permute.xlu0 %610
    %614 = vrot.lane.b32.xlu0 %v593, 16
    %v615 = vpop.permute.xlu0 %614
    %v617 = vsel %vm53, %v607, %v611
    %v618 = vsel %vm136, %v617, %v611
    %v619 = vsel %vm138, %v618, %v615
    %v620 = vld [vmem:[#allocation2 + $0x7] sm:$0x1]
    %v621 = vsel %vm53, %v607, 0
    %623 = vmatpush.msra.mxu0 0.0
    %624 = vmatpush.msra.mxu0 0.0
    %625 = vmatpush.msra.mxu0 0.0
    %626 = vmatpush.msra.mxu0 0.0
    %627 = vmatpush.msra.mxu0 0.0
    %628 = vmatpush.msra.mxu0 0.0
    %629 = vmatpush.msra.mxu0 0.0
    %630 = vmatpush.msra.mxu0 0.0
    %631 = vmatpush.msra.mxu0 0.0
    %632 = vmatpush.msra.mxu0 0.0
    %633 = vmatpush.msra.mxu0 0.0
    %634 = vmatpush.msra.mxu0 0.0
    %635 = vmatpush.msra.mxu0 0.0
    %636 = vmatpush.msra.mxu0 0.0
    %637 = vmatpush.msra.mxu0 %v49
    %638 = vmatpush.msra.mxu0 %v48
    %639 = vmatmul.f32.gmra.mxu0 %v621
    %v640 = vpop.f32.mrf.mxu0
    %v641 = vadd.f32 %v50, %v640
    %642 = vdwg.mxu0
    %v643 = vadd.f32 %v620, %v641
    %v644 = vxor.u32 %v643, 2147483648
    %v645 = vmul.f32 %v644, 1.442695
    %v646 = vpow.pop %v645
    %v647 = vadd.f32 %v646, 1.0
    %v648 = vrcp.pop %v647
    %v649 = vmul.f32 %v647, %v648
    %v650 = vsub.f32 1.0, %v649
    %v651 = vmul.f32 %v648, %v650
    %v652 = vadd.f32 %v648, %v651
    %vm653 = vweird.f32 %v647
    %vm654 = vweird.f32 %v648
    %vm655 = vmor %vm653, %vm654
    %v656 = vsel %vm655, %v648, %v652
    %v657 = vand.u32 2147483647, %v647
    %vm658 = vcmp.eq.f32.partialorder %v657, 8.507059e+37
    %v659 = vand.u32 %v647, 2147483648
    %v660 = vor.u32 1.1754944e-38, %v659
    %v661 = vsel %vm658, %v660, %v656
    %v662 = vmul.f32 1.0, %v661
    %664 = vrot.lane.b32.xlu0 %v641, 96
    %v665 = vpop.permute.xlu0 %664
    %v667 = vmul.f32 %v662, %v665
    %669 = vrot.lane.b32.xlu0 %v667, 32
    %v670 = vpop.permute.xlu0 %669
    %v672 = vadd.f32 %v620, %v670
    %v673 = vtanh.pop %v672
    %v674 = vsub.f32 %v604, %v673
    %676 = vrot.lane.b32.xlu0 %v674, 112
    %v677 = vpop.permute.xlu0 %676
    %v679 = vmul.f32 %v662, %v677
    %681 = vrot.lane.b32.xlu0 %v679, 16
    %v682 = vpop.permute.xlu0 %681
    %v684 = vadd.f32 %v673, %v682
    %686 = vrot.lane.b32.xlu0 %v684, 96
    %v687 = vpop.permute.xlu0 %686
    %690 = vrot.lane.b32.xlu0 %v662, 16
    %v691 = vpop.permute.xlu0 %690
    %694 = vrot.lane.b32.xlu0 %v673, 16
    %v695 = vpop.permute.xlu0 %694
    %v697 = vsel %vm53, %v687, %v691
    %v698 = vsel %vm136, %v697, %v691
    %v699 = vsel %vm138, %v698, %v695
    %v701 = vrot.slane %v219, 7
    %v704 = vrot.slane %v299, 6
    %v707 = vrot.slane %v379, 5
    %v710 = vrot.slane %v459, 4
    %v713 = vrot.slane %v539, 3
    %v716 = vrot.slane %v619, 2
    %v719 = vrot.slane %v699, 1
    %vm721 = vcmask 1040384
    %v722 = vsel %vm721, %v139, %v701
    %vm723 = vcmask 1041408
    %v724 = vsel %vm723, %v722, %v704
    %vm725 = vcmask 1042432
    %v726 = vsel %vm725, %v724, %v707
    %vm727 = vcmask 1043456
    %v728 = vsel %vm727, %v726, %v710
    %vm729 = vcmask 1044480
    %v730 = vsel %vm729, %v728, %v713
    %vm731 = vcmask 1045504
    %v732 = vsel %vm731, %v730, %v716
    %vm733 = vcmask 1046528
    %v734 = vsel %vm733, %v732, %v719
    %vm735 = vcmask 523264
    %736 = vst.msk [vmem:[#allocation7] sm:$0xff] %vm735, %v734
    // Predicated region
    $region26: #{tpu_custom_call.1} parent=1 // pred_check
      _
    $region27: #{tpu_custom_call.1} parent=1 // pred_check_branch
      %738 = sbr.rel (0) target = $region29
    $region28: #{tpu_custom_call.1} parent=1 // pred_region
      %740 = vsyncadd [#allocation4], 0
      %s742 = sshll.u32 [#allocation7], 4
      %s743 = int_to_ptr.vmem [resolvable:$true] %s742
      %s744 = sshll.u32 %s4, 4
      %s745 = int_to_ptr.hbm [resolvable:$true] %s744
      %747 = dma.vmem_to_hbm [thread:$0]  %s743, 128, %s745, [#allocation4]
    $region29: #{tpu_custom_call.1} parent=1 // pred_fallthru
      _
    // Predicated region
    $region30: #{tpu_custom_call.1} parent=1 // pred_check
      _
    $region31: #{tpu_custom_call.1} parent=1 // pred_check_branch
      %749 = sbr.rel (0) target = $region33
    $region32: #{tpu_custom_call.1} parent=1 // pred_region
      %751 = dma.done [#allocation4], 128
    $region33: #{tpu_custom_call.1} parent=1 // pred_fallthru
      _
    %752 = vsyncpa [#allocation3], 1
    %753 = vsyncpa [#allocation6], 1
    %754 = vsyncpa [#allocation4], 1

</llo_original>
